<compile_context>
chip_gen: v7x
topology: tpu7x:2x2x1
jax: 0.10.0
libtpu: 0.0.40
codegen_flags: <defaults>
</compile_context>

<pallas_src>
import jax
import jax.numpy as jnp
from jax.experimental import pallas as pl
from jax.experimental.pallas import tpu as pltpu


def _round_up(n, m):
    return ((n + m - 1) // m) * m


def _default_tile_b(B):
    # Big lane-aligned tiles amortize per-step overhead; cap at 16K lanes
    # (h2 temporary = 32*T*4B = 2 MiB at T=16K -> safe on v7x's smaller VMEM),
    # and keep >=4 tiles when B is large so megacore sharding has work.
    cap = 16 * 1024
    if B <= cap:
        return max(128, _round_up(B, 128))
    quarter = -(-B // 4)
    return min(cap, max(128, _round_up(quarter, 128)))


def _mlp_kernel(x_ref, w1_ref, b1_ref, w2_ref, b2_ref, w3_ref, b3_ref, o_ref):
    # x_ref: (S, TILE_B), batch on the lane axis. Weights/biases are whole-array resident.
    x = x_ref[...]
    # Layer 1: (16, S) @ (S, T) -> (16, T); bias broadcasts over lanes; ReLU on the VPU.
    h1 = jnp.dot(w1_ref[...], x, preferred_element_type=jnp.float32) + b1_ref[...]
    h1 = jnp.maximum(h1, 0.0)
    # Layer 2: (32, 16) @ (16, T) -> (32, T).
    h2 = jnp.dot(w2_ref[...], h1, preferred_element_type=jnp.float32) + b2_ref[...]
    h2 = jnp.maximum(h2, 0.0)
    # Layer 3 on the MXU: (1, 32) @ (32, T) -> (1, T). The vector-extended slot is idle
    # at these tile sizes, so this offloads the old VPU multiply+reduce for free.
    y = jnp.dot(w3_ref[...], h2, preferred_element_type=jnp.float32) + b3_ref[...]
    o_ref[...] = y.astype(o_ref.dtype)


def fcnn_reference(x, params):
    """Pure-JAX forward of the same module (also used as the tiny-batch fast path)."""
    w1, b1, w2, b2, w3, b3 = params
    h1 = jnp.maximum(x @ w1.T + b1.T, 0.0)
    h2 = jnp.maximum(h1 @ w2.T + b2.T, 0.0)
    return h2 @ w3.T + b3.T


def fcnn_forward(x, params, tile_b=None, min_pallas_batch=2048):
    """x: (B, stateSize) float32. Returns (B, 1) float32, matching PyTorch fcnn.forward."""
    w1, b1, w2, b2, w3, b3 = params
    x = jnp.asarray(x, jnp.float32)
    B, S = x.shape

    # Small-batch fast path: launch + layout plumbing dominates below ~2K rows.
    if B < min_pallas_batch:
        return fcnn_reference(x, params)

    if tile_b is None:
        tile_b = _default_tile_b(B)
    else:
        tile_b = max(128, _round_up(int(tile_b), 128))  # enforce lane divisibility

    num_tiles = pl.cdiv(B, tile_b)

    # Layout plumbing: batch onto the lane axis. No zero-pad (ragged grid handles the tail);
    # the transpose is allowed to fuse into the Pallas operand so x stays ~1 HBM traversal.
    x_t = x.T  # (S, B)

    out_t = pl.pallas_call(
        _mlp_kernel,
        out_shape=jax.ShapeDtypeStruct((1, B), jnp.float32),
        grid=(num_tiles,),
        in_specs=[
            pl.BlockSpec((S, tile_b), lambda i: (0, i)),   # x tile (auto double-buffered)
            pl.BlockSpec(w1.shape, lambda i: (0, 0)),      # weights/biases stay VMEM-resident
            pl.BlockSpec(b1.shape, lambda i: (0, 0)),
            pl.BlockSpec(w2.shape, lambda i: (0, 0)),
            pl.BlockSpec(b2.shape, lambda i: (0, 0)),
            pl.BlockSpec(w3.shape, lambda i: (0, 0)),
            pl.BlockSpec(b3.shape, lambda i: (0, 0)),
        ],
        out_specs=pl.BlockSpec((1, tile_b), lambda i: (0, i)),  # lane-dense unmasked stores
        compiler_params=pltpu.CompilerParams(
            dimension_semantics=("parallel",),           # shard batch tiles across TCs (v7x)
            allow_input_fusion=[True] + [False] * 6,     # let XLA fuse the x transpose in
        ),
    )(x_t, w1, b1, w2, b2, w3, b3)

    # (1, B) row -> (B, 1) column; ragged-tile OOB lanes were never written to out_t.
    return out_t.reshape(B, 1)


def init_params(key, state_size):
    """Deterministic init mimicking nn.Linear default (uniform in +-1/sqrt(fan_in)).
    Kernel layout: all weights are (out, in): w1 (16,S), w2 (32,16), w3 (1,32);
    biases are column vectors (out, 1)."""
    shapes = [
        ((16, state_size), (16, 1), state_size),
        ((32, 16), (32, 1), 16),
        ((1, 32), (1, 1), 32),
    ]
    params = []
    for i, (w_shape, b_shape, fan_in) in enumerate(shapes):
        kw, kb = jax.random.split(jax.random.fold_in(key, i))
        bound = 1.0 / jnp.sqrt(jnp.float32(fan_in))
        w = jax.random.uniform(kw, w_shape, jnp.float32, -bound, bound)
        b = jax.random.uniform(kb, b_shape, jnp.float32, -bound, bound)
        params.extend([w, b])
    return tuple(params)


if __name__ == "__main__":
    key = jax.random.PRNGKey(0)
    state_size = 4

    kx, kp, kx2 = jax.random.split(key, 3)
    params = init_params(kp, state_size)

    # Small shape consistent with the module (NEURWIN feeds tiny state vectors);
    # min_pallas_batch=0 forces the Pallas kernel path so it is actually exercised.
    x_small = jax.random.normal(kx, (8, state_size), jnp.float32)
    out_small = jax.block_until_ready(fcnn_forward(x_small, params, min_pallas_batch=0))
    ref_small = fcnn_reference(x_small, params)
    assert out_small.shape == (8, 1)
    assert jnp.allclose(out_small, ref_small, atol=1e-4, rtol=1e-4)

    # Non-tile-aligned batch exercising the ragged multi-tile grid (no pad pass).
    x_big = jax.random.normal(kx2, (300, state_size), jnp.float32)
    out_big = jax.block_until_ready(
        fcnn_forward(x_big, params, tile_b=128, min_pallas_batch=0))
    ref_big = fcnn_reference(x_big, params)
    assert out_big.shape == (300, 1)
    assert jnp.allclose(out_big, ref_big, atol=1e-4, rtol=1e-4)

    # Default path for tiny batches = fused XLA fast path (Pallas bypassed).
    out_fast = jax.block_until_ready(fcnn_forward(x_small, params))
    assert out_fast.shape == (8, 1)
    assert jnp.allclose(out_fast, ref_small, atol=1e-6, rtol=1e-6)

    print("KERNEL_OK")
</pallas_src>

<mosaic_0001>
module attributes {stable_mosaic.version = 11 : i64} {
  func.func @_mlp_kernel(%arg0: i32, %arg1: memref<4x128xf32, #tpu.memory_space<vmem>>, %arg2: memref<16x4xf32, #tpu.memory_space<vmem>>, %arg3: memref<16x1xf32, #tpu.memory_space<vmem>>, %arg4: memref<32x16xf32, #tpu.memory_space<vmem>>, %arg5: memref<32x1xf32, #tpu.memory_space<vmem>>, %arg6: memref<1x32xf32, #tpu.memory_space<vmem>>, %arg7: memref<1x1xf32, #tpu.memory_space<vmem>>, %arg8: memref<1x128xf32, #tpu.memory_space<vmem>>) attributes {dimension_semantics = [#tpu.dimension_semantics<parallel>], iteration_bounds = array<i64: 1>, scalar_prefetch = 0 : i64, scratch_operands = 0 : i64, tpu.core_type = #tpu.core_type<tc>, window_params = [{transform_indices = @transform_0, window_bounds = array<i64: 4, 128>}, {pipeline_mode = #tpu.pipeline_mode<synchronous>, transform_indices = @transform_1, window_bounds = array<i64: 16, 4>}, {pipeline_mode = #tpu.pipeline_mode<synchronous>, transform_indices = @transform_2, window_bounds = array<i64: 16, 1>}, {pipeline_mode = #tpu.pipeline_mode<synchronous>, transform_indices = @transform_3, window_bounds = array<i64: 32, 16>}, {pipeline_mode = #tpu.pipeline_mode<synchronous>, transform_indices = @transform_4, window_bounds = array<i64: 32, 1>}, {pipeline_mode = #tpu.pipeline_mode<synchronous>, transform_indices = @transform_5, window_bounds = array<i64: 1, 32>}, {pipeline_mode = #tpu.pipeline_mode<synchronous>, transform_indices = @transform_6, window_bounds = array<i64: 1, 1>}, {transform_indices = @transform_7, window_bounds = array<i64: 1, 128>}]} {
    %c0 = arith.constant 0 : index
    %c0_0 = arith.constant 0 : index
    %0 = vector.load %arg1[%c0, %c0_0] : memref<4x128xf32, #tpu.memory_space<vmem>>, vector<4x128xf32>
    %c0_1 = arith.constant 0 : index
    %c0_2 = arith.constant 0 : index
    %1 = vector.load %arg2[%c0_1, %c0_2] : memref<16x4xf32, #tpu.memory_space<vmem>>, vector<16x4xf32>
    %cst = arith.constant dense<0.000000e+00> : vector<16x128xf32>
    %2 = tpu.matmul %1, %0, %cst {dimension_numbers = #tpu.dot_dimension_numbers<[1], [0], [0], [1], [0, 0, 1, 1], [], []>} : vector<16x4xf32>, vector<4x128xf32>, vector<16x128xf32> -> vector<16x128xf32>
    %c0_3 = arith.constant 0 : index
    %c0_4 = arith.constant 0 : index
    %3 = vector.load %arg3[%c0_3, %c0_4] : memref<16x1xf32, #tpu.memory_space<vmem>>, vector<16x1xf32>
    %4 = vector.broadcast %3 : vector<16x1xf32> to vector<16x128xf32>
    %5 = arith.addf %2, %4 : vector<16x128xf32>
    %cst_5 = arith.constant 0.000000e+00 : f32
    %6 = vector.broadcast %cst_5 : f32 to vector<16x128xf32>
    %7 = arith.maximumf %5, %6 : vector<16x128xf32>
    %c0_6 = arith.constant 0 : index
    %c0_7 = arith.constant 0 : index
    %8 = vector.load %arg4[%c0_6, %c0_7] : memref<32x16xf32, #tpu.memory_space<vmem>>, vector<32x16xf32>
    %cst_8 = arith.constant dense<0.000000e+00> : vector<32x128xf32>
    %9 = tpu.matmul %8, %7, %cst_8 {dimension_numbers = #tpu.dot_dimension_numbers<[1], [0], [0], [1], [0, 0, 1, 1], [], []>} : vector<32x16xf32>, vector<16x128xf32>, vector<32x128xf32> -> vector<32x128xf32>
    %c0_9 = arith.constant 0 : index
    %c0_10 = arith.constant 0 : index
    %10 = vector.load %arg5[%c0_9, %c0_10] : memref<32x1xf32, #tpu.memory_space<vmem>>, vector<32x1xf32>
    %11 = vector.broadcast %10 : vector<32x1xf32> to vector<32x128xf32>
    %12 = arith.addf %9, %11 : vector<32x128xf32>
    %cst_11 = arith.constant 0.000000e+00 : f32
    %13 = vector.broadcast %cst_11 : f32 to vector<32x128xf32>
    %14 = arith.maximumf %12, %13 : vector<32x128xf32>
    %c0_12 = arith.constant 0 : index
    %c0_13 = arith.constant 0 : index
    %15 = vector.load %arg6[%c0_12, %c0_13] : memref<1x32xf32, #tpu.memory_space<vmem>>, vector<1x32xf32>
    %cst_14 = arith.constant dense<0.000000e+00> : vector<1x128xf32>
    %16 = tpu.matmul %15, %14, %cst_14 {dimension_numbers = #tpu.dot_dimension_numbers<[1], [0], [0], [1], [0, 0, 1, 1], [], []>} : vector<1x32xf32>, vector<32x128xf32>, vector<1x128xf32> -> vector<1x128xf32>
    %c0_15 = arith.constant 0 : index
    %c0_16 = arith.constant 0 : index
    %17 = vector.load %arg7[%c0_15, %c0_16] : memref<1x1xf32, #tpu.memory_space<vmem>>, vector<1x1xf32>
    %18 = vector.broadcast %17 : vector<1x1xf32> to vector<1x128xf32>
    %19 = arith.addf %16, %18 : vector<1x128xf32>
    %c0_17 = arith.constant 0 : index
    %c0_18 = arith.constant 0 : index
    %20 = vector.load %arg8[%c0_17, %c0_18] : memref<1x128xf32, #tpu.memory_space<vmem>>, vector<1x128xf32>
    tpu.vector_store %arg8[%c0_17, %c0_18], %19 {strides = array<i32>} : memref<1x128xf32, #tpu.memory_space<vmem>>, vector<1x128xf32>,
    return
  }
  func.func @transform_0(%arg0: i32) -> (i32, i32) {
    %c0_i32 = arith.constant 0 : i32
    %c0_i32_0 = arith.constant 0 : i32
    return %c0_i32, %arg0 : i32, i32
  }
  func.func @transform_1(%arg0: i32) -> (i32, i32) {
    %c0_i32 = arith.constant 0 : i32
    %c0_i32_0 = arith.constant 0 : i32
    %c0_i32_1 = arith.constant 0 : i32
    return %c0_i32, %c0_i32_0 : i32, i32
  }
  func.func @transform_2(%arg0: i32) -> (i32, i32) {
    %c0_i32 = arith.constant 0 : i32
    %c0_i32_0 = arith.constant 0 : i32
    %c0_i32_1 = arith.constant 0 : i32
    return %c0_i32, %c0_i32_0 : i32, i32
  }
  func.func @transform_3(%arg0: i32) -> (i32, i32) {
    %c0_i32 = arith.constant 0 : i32
    %c0_i32_0 = arith.constant 0 : i32
    %c0_i32_1 = arith.constant 0 : i32
    return %c0_i32, %c0_i32_0 : i32, i32
  }
  func.func @transform_4(%arg0: i32) -> (i32, i32) {
    %c0_i32 = arith.constant 0 : i32
    %c0_i32_0 = arith.constant 0 : i32
    %c0_i32_1 = arith.constant 0 : i32
    return %c0_i32, %c0_i32_0 : i32, i32
  }
  func.func @transform_5(%arg0: i32) -> (i32, i32) {
    %c0_i32 = arith.constant 0 : i32
    %c0_i32_0 = arith.constant 0 : i32
    %c0_i32_1 = arith.constant 0 : i32
    return %c0_i32, %c0_i32_0 : i32, i32
  }
  func.func @transform_6(%arg0: i32) -> (i32, i32) {
    %c0_i32 = arith.constant 0 : i32
    %c0_i32_0 = arith.constant 0 : i32
    %c0_i32_1 = arith.constant 0 : i32
    return %c0_i32, %c0_i32_0 : i32, i32
  }
  func.func @transform_7(%arg0: i32) -> (i32, i32) {
    %c0_i32 = arith.constant 0 : i32
    %c0_i32_0 = arith.constant 0 : i32
    return %c0_i32, %arg0 : i32, i32
  }
}

</mosaic_0001>

<llo_original>
// kernel: tpu_custom_call.1
$region0: #{tpu_custom_call.1}
  #allocation0 [shape = 'u32[]', space=smem, size = 0x4, offset = 0x4, fixed_abs, tag = 'smem constant byte address 0x4 - core index']
  #allocation1 [shape = 'u32[144,128]{1,0:T(1,128)}', space=vmem, size = 0x12000, scoped, tag = 'internal scratch']
  #allocation2 [shape = 'f32[1,1]{1,0:T(1,128)S(1)}', space=vmem, size = 0x200, scoped, tag = 'scoped memory for tpu_custom_call.1']
  %s0 = inlined_call_operand.vmem [shape: f32[4,8], index: 0, kind: input, shape index: {}]
  %s1 = inlined_call_operand.vmem [shape: f32[16,4], index: 1, kind: input, shape index: {}]
  %s2 = inlined_call_operand.vmem [shape: f32[16,1], index: 2, kind: input, shape index: {}]
  %s3 = inlined_call_operand.vmem [shape: f32[32,16], index: 3, kind: input, shape index: {}]
  %s4 = inlined_call_operand.vmem [shape: f32[32,1], index: 4, kind: input, shape index: {}]
  %s5 = inlined_call_operand.vmem [shape: f32[1,32], index: 5, kind: input, shape index: {}]
  %s6 = inlined_call_operand.<no memory space> [shape: f32[1,1], index: 6, kind: input, shape index: {}]
  %s7 = inlined_call_operand.hbm [shape: f32[1,8], index: 7, kind: output, shape index: {}]
  %s8 = sld [smem:[#allocation0]]
  $region38: #{tpu_custom_call.1} parent=0
    _
  %s10 = ssub.s32 1, %s8
  %s11 = scalar_select 0, %s10, %s8
  %v12 = vstv %s6
  %13 = vst [vmem:[#allocation2] sm:$0x1] %v12
  $region1: #{tpu_custom_call.1} parent=0
    #allocation3 [shape = 'u8[512]{0}', space=vmem, size = 0x400, scoped, tag = 'output window, operand 0, single buffered']
    #allocation4 [shape = 's32[1]{0}', space=sflag, size = 0x4, scoped, tag = 'scoped memory for tpu_custom_call.1']
    %14 = vsyncpa [#allocation4], 0
    // Predicated region
    $region2: #{tpu_custom_call.1} parent=1 // pred_check
      _
    $region3: #{tpu_custom_call.1} parent=1 // pred_check_branch
      %16 = sbr.rel (0) target = $region5
    $region4: #{tpu_custom_call.1} parent=1 // pred_region
      _
    $region5: #{tpu_custom_call.1} parent=1 // pred_fallthru
      _
    // Predicated region
    $region6: #{tpu_custom_call.1} parent=1 // pred_check
      _
    $region7: #{tpu_custom_call.1} parent=1 // pred_check_branch
      %18 = sbr.rel (0) target = $region9
    $region8: #{tpu_custom_call.1} parent=1 // pred_region
      _
    $region9: #{tpu_custom_call.1} parent=1 // pred_fallthru
      _
    // Predicated region
    $region10: #{tpu_custom_call.1} parent=1 // pred_check
      _
    $region11: #{tpu_custom_call.1} parent=1 // pred_check_branch
      %20 = sbr.rel (0) target = $region13
    $region12: #{tpu_custom_call.1} parent=1 // pred_region
      _
    $region13: #{tpu_custom_call.1} parent=1 // pred_fallthru
      _
    // Predicated region
    $region14: #{tpu_custom_call.1} parent=1 // pred_check
      _
    $region15: #{tpu_custom_call.1} parent=1 // pred_check_branch
      %22 = sbr.rel (0) target = $region17
    $region16: #{tpu_custom_call.1} parent=1 // pred_region
      _
    $region17: #{tpu_custom_call.1} parent=1 // pred_fallthru
      _
    // Predicated region
    $region18: #{tpu_custom_call.1} parent=1 // pred_check
      _
    $region19: #{tpu_custom_call.1} parent=1 // pred_check_branch
      %24 = sbr.rel (0) target = $region21
    $region20: #{tpu_custom_call.1} parent=1 // pred_region
      _
    $region21: #{tpu_custom_call.1} parent=1 // pred_fallthru
      _
    // Predicated region
    $region22: #{tpu_custom_call.1} parent=1 // pred_check
      _
    $region23: #{tpu_custom_call.1} parent=1 // pred_check_branch
      %26 = sbr.rel (0) target = $region25
    $region24: #{tpu_custom_call.1} parent=1 // pred_region
      _
    $region25: #{tpu_custom_call.1} parent=1 // pred_fallthru
      _
    // Predicated region
    $region26: #{tpu_custom_call.1} parent=1 // pred_check
      _
    $region27: #{tpu_custom_call.1} parent=1 // pred_check_branch
      %28 = sbr.rel (0) target = $region29
    $region28: #{tpu_custom_call.1} parent=1 // pred_region
      _
    $region29: #{tpu_custom_call.1} parent=1 // pred_fallthru
      _
    %v29 = vld [vmem:[%s0] sm:$0xf]
    %v30 = vld [vmem:[%s1] sm:$0xff]
    %v31 = vld [vmem:[%s1 + $0x8] sm:$0xff]
    %v32 = vld [vmem:[%s2] sm:$0xff]
    %v33 = vld [vmem:[%s2 + $0x8] sm:$0xff]
    %35 = vset.pattern.permute.xlu0 0
    %36 = vperm.xlu0 %35, %v32
    %v37 = vpop.permute.xlu0 %36
    %40 = vset.pattern.permute.xlu0 0
    %41 = vperm.xlu0 %40, %v33
    %v42 = vpop.permute.xlu0 %41
    %vm44 = vcmask 31744
    %v46 = vsel %vm44, %v30, 0
    %v49 = vsel %vm44, %v31, 0
    %vm51 = vcmask 1043456
    %v53 = vsel %vm51, %v29, 0
    %55 = vmatprep.subr.mxu0 0.0
    %56 = vmatpush1.msra.mxu0 %v53
    %57 = vmatprep.subr.mxu0 0.0
    %58 = vmatpush1.msra.mxu0 0.0
    %59 = vmatprep.subr.mxu0 0.0
    %60 = vmatpush1.msra.mxu0 0.0
    %61 = vmatprep.subr.mxu0 0.0
    %62 = vmatpush1.msra.mxu0 0.0
    %63 = vmatprep.subr.mxu0 0.0
    %64 = vmatpush1.msra.mxu0 0.0
    %65 = vmatprep.subr.mxu0 0.0
    %66 = vmatpush1.msra.mxu0 0.0
    %67 = vmatprep.subr.mxu0 0.0
    %68 = vmatpush1.msra.mxu0 0.0
    %69 = vmatprep.subr.mxu0 0.0
    %70 = vmatpush1.msra.mxu0 0.0
    %71 = vmatprep.subr.mxu0 0.0
    %72 = vmatpush1.msra.mxu0 0.0
    %73 = vmatprep.subr.mxu0 0.0
    %74 = vmatpush1.msra.mxu0 0.0
    %75 = vmatprep.subr.mxu0 0.0
    %76 = vmatpush1.msra.mxu0 0.0
    %77 = vmatprep.subr.mxu0 0.0
    %78 = vmatpush1.msra.mxu0 0.0
    %79 = vmatprep.subr.mxu0 0.0
    %80 = vmatpush1.msra.mxu0 0.0
    %81 = vmatprep.subr.mxu0 0.0
    %82 = vmatpush1.msra.mxu0 0.0
    %83 = vmatprep.subr.mxu0 0.0
    %84 = vmatpush1.msra.mxu0 0.0
    %85 = vmatprep.subr.mxu0 0.0
    %86 = vmatpush1.msra.mxu0 0.0
    %87 = vmatprep.subr.mxu0 0.0
    %88 = vmatpush1.msra.mxu0 0.0
    %89 = vmatprep.subr.mxu0 0.0
    %90 = vmatpush1.msra.mxu0 0.0
    %91 = vmatprep.subr.mxu0 0.0
    %92 = vmatpush1.msra.mxu0 0.0
    %93 = vmatprep.subr.mxu0 0.0
    %94 = vmatpush1.msra.mxu0 0.0
    %95 = vmatprep.subr.mxu0 0.0
    %96 = vmatpush1.msra.mxu0 0.0
    %97 = vmatprep.subr.mxu0 0.0
    %98 = vmatpush1.msra.mxu0 0.0
    %99 = vmatprep.subr.mxu0 0.0
    %100 = vmatpush1.msra.mxu0 0.0
    %101 = vmatprep.subr.mxu0 0.0
    %102 = vmatpush1.msra.mxu0 0.0
    %103 = vmatprep.subr.mxu0 0.0
    %104 = vmatpush1.msra.mxu0 0.0
    %105 = vmatprep.subr.mxu0 0.0
    %106 = vmatpush1.msra.mxu0 0.0
    %107 = vmatprep.subr.mxu0 0.0
    %108 = vmatpush1.msra.mxu0 0.0
    %109 = vmatprep.subr.mxu0 0.0
    %110 = vmatpush1.msra.mxu0 0.0
    %111 = vmatprep.subr.mxu0 0.0
    %112 = vmatpush1.msra.mxu0 0.0
    %113 = vmatprep.subr.mxu0 0.0
    %114 = vmatpush1.msra.mxu0 0.0
    %115 = vmatprep.subr.mxu0 0.0
    %116 = vmatpush1.msra.mxu0 0.0
    %117 = vmatprep.subr.mxu0 0.0
    %118 = vmatpush1.msra.mxu0 0.0
    %119 = vmatprep.mubr.f32.mxu0 0.0
    %120 = vmatmul.mubr.f32.gmra.mrb[0].mxu0 %v46
    %v121 = vpop.f32.mrb[0].mxu0
    %v122 = vadd.f32 %v37, %v121
    %v123 = vpop.f32.mrb[0].mxu0
    %124 = vmatprep.mubr.f32.mxu0 0.0
    %125 = vmatmul.mubr.f32.gmra.mrb[0].mxu0 %v49
    %v126 = vpop.f32.mrb[0].mxu0
    %v127 = vadd.f32 %v42, %v126
    %v128 = vpop.f32.mrb[0].mxu0
    %129 = vdwg.mxu0
    %v130 = vmax.f32 %v122, 0.0
    %v131 = vmax.f32 %v127, 0.0
    %v132 = vld [vmem:[%s3] sm:$0xff]
    %v133 = vld [vmem:[%s3 + $0x8] sm:$0xff]
    %v134 = vld [vmem:[%s3 + $0x10] sm:$0xff]
    %v135 = vld [vmem:[%s3 + $0x18] sm:$0xff]
    %v136 = vld [vmem:[%s4] sm:$0xff]
    %v137 = vld [vmem:[%s4 + $0x8] sm:$0xff]
    %v138 = vld [vmem:[%s4 + $0x10] sm:$0xff]
    %v139 = vld [vmem:[%s4 + $0x18] sm:$0xff]
    %141 = vset.pattern.permute.xlu0 0
    %142 = vperm.xlu0 %141, %v136
    %v143 = vpop.permute.xlu0 %142
    %146 = vset.pattern.permute.xlu0 0
    %147 = vperm.xlu0 %146, %v137
    %v148 = vpop.permute.xlu0 %147
    %151 = vset.pattern.permute.xlu0 0
    %152 = vperm.xlu0 %151, %v138
    %v153 = vpop.permute.xlu0 %152
    %156 = vset.pattern.permute.xlu0 0
    %157 = vperm.xlu0 %156, %v139
    %v158 = vpop.permute.xlu0 %157
    %vm160 = vcmask 130048
    %v162 = vsel %vm160, %v132, 0
    %v165 = vsel %vm160, %v133, 0
    %v168 = vsel %vm160, %v134, 0
    %v171 = vsel %vm160, %v135, 0
    %173 = vmatprep.subr.mxu0 0.0
    %174 = vmatpush1.msra.mxu0 %v130
    %175 = vmatprep.subr.mxu0 0.0
    %176 = vmatpush1.msra.mxu0 %v131
    %177 = vmatprep.subr.mxu0 0.0
    %178 = vmatpush1.msra.mxu0 0.0
    %179 = vmatprep.subr.mxu0 0.0
    %180 = vmatpush1.msra.mxu0 0.0
    %181 = vmatprep.subr.mxu0 0.0
    %182 = vmatpush1.msra.mxu0 0.0
    %183 = vmatprep.subr.mxu0 0.0
    %184 = vmatpush1.msra.mxu0 0.0
    %185 = vmatprep.subr.mxu0 0.0
    %186 = vmatpush1.msra.mxu0 0.0
    %187 = vmatprep.subr.mxu0 0.0
    %188 = vmatpush1.msra.mxu0 0.0
    %189 = vmatprep.subr.mxu0 0.0
    %190 = vmatpush1.msra.mxu0 0.0
    %191 = vmatprep.subr.mxu0 0.0
    %192 = vmatpush1.msra.mxu0 0.0
    %193 = vmatprep.subr.mxu0 0.0
    %194 = vmatpush1.msra.mxu0 0.0
    %195 = vmatprep.subr.mxu0 0.0
    %196 = vmatpush1.msra.mxu0 0.0
    %197 = vmatprep.subr.mxu0 0.0
    %198 = vmatpush1.msra.mxu0 0.0
    %199 = vmatprep.subr.mxu0 0.0
    %200 = vmatpush1.msra.mxu0 0.0
    %201 = vmatprep.subr.mxu0 0.0
    %202 = vmatpush1.msra.mxu0 0.0
    %203 = vmatprep.subr.mxu0 0.0
    %204 = vmatpush1.msra.mxu0 0.0
    %205 = vmatprep.subr.mxu0 0.0
    %206 = vmatpush1.msra.mxu0 0.0
    %207 = vmatprep.subr.mxu0 0.0
    %208 = vmatpush1.msra.mxu0 0.0
    %209 = vmatprep.subr.mxu0 0.0
    %210 = vmatpush1.msra.mxu0 0.0
    %211 = vmatprep.subr.mxu0 0.0
    %212 = vmatpush1.msra.mxu0 0.0
    %213 = vmatprep.subr.mxu0 0.0
    %214 = vmatpush1.msra.mxu0 0.0
    %215 = vmatprep.subr.mxu0 0.0
    %216 = vmatpush1.msra.mxu0 0.0
    %217 = vmatprep.subr.mxu0 0.0
    %218 = vmatpush1.msra.mxu0 0.0
    %219 = vmatprep.subr.mxu0 0.0
    %220 = vmatpush1.msra.mxu0 0.0
    %221 = vmatprep.subr.mxu0 0.0
    %222 = vmatpush1.msra.mxu0 0.0
    %223 = vmatprep.subr.mxu0 0.0
    %224 = vmatpush1.msra.mxu0 0.0
    %225 = vmatprep.subr.mxu0 0.0
    %226 = vmatpush1.msra.mxu0 0.0
    %227 = vmatprep.subr.mxu0 0.0
    %228 = vmatpush1.msra.mxu0 0.0
    %229 = vmatprep.subr.mxu0 0.0
    %230 = vmatpush1.msra.mxu0 0.0
    %231 = vmatprep.subr.mxu0 0.0
    %232 = vmatpush1.msra.mxu0 0.0
    %233 = vmatprep.subr.mxu0 0.0
    %234 = vmatpush1.msra.mxu0 0.0
    %235 = vmatprep.subr.mxu0 0.0
    %236 = vmatpush1.msra.mxu0 0.0
    %237 = vmatprep.mubr.f32.mxu0 0.0
    %238 = vmatmul.mubr.f32.gmra.mrb[0].mxu0 %v162
    %v239 = vpop.f32.mrb[0].mxu0
    %v240 = vadd.f32 %v143, %v239
    %v241 = vpop.f32.mrb[0].mxu0
    %242 = vmatprep.mubr.f32.mxu0 0.0
    %243 = vmatmul.mubr.f32.gmra.mrb[0].mxu0 %v165
    %v244 = vpop.f32.mrb[0].mxu0
    %v245 = vadd.f32 %v148, %v244
    %v246 = vpop.f32.mrb[0].mxu0
    %247 = vmatprep.mubr.f32.mxu0 0.0
    %248 = vmatmul.mubr.f32.gmra.mrb[0].mxu0 %v168
    %v249 = vpop.f32.mrb[0].mxu0
    %v250 = vadd.f32 %v153, %v249
    %v251 = vpop.f32.mrb[0].mxu0
    %252 = vmatprep.mubr.f32.mxu0 0.0
    %253 = vmatmul.mubr.f32.gmra.mrb[0].mxu0 %v171
    %v254 = vpop.f32.mrb[0].mxu0
    %v255 = vadd.f32 %v158, %v254
    %v256 = vpop.f32.mrb[0].mxu0
    %257 = vdwg.mxu0
    %v258 = vmax.f32 %v240, 0.0
    %v259 = vmax.f32 %v245, 0.0
    %v260 = vmax.f32 %v250, 0.0
    %v261 = vmax.f32 %v255, 0.0
    %v262 = vld [vmem:[%s5] sm:$0x1]
    %v263 = vld [vmem:[#allocation2] sm:$0x1]
    %265 = vset.pattern.permute.xlu0 0
    %266 = vperm.xlu0 %265, %v263
    %v267 = vpop.permute.xlu0 %266
    %v269 = vlaneseq
    %v270 = vshrl.u32 %v269, 7
    %v271 = vsub.s32 0, %v270
    %v272 = vrot.slane %v267, %v271
    %vm273 = vcmask 261120
    %v275 = vsel %vm273, %v262, 0
    %277 = vmatprep.subr.mxu0 0.0
    %278 = vmatpush1.msra.mxu0 %v258
    %279 = vmatprep.subr.mxu0 0.0
    %280 = vmatpush1.msra.mxu0 %v259
    %281 = vmatprep.subr.mxu0 0.0
    %282 = vmatpush1.msra.mxu0 %v260
    %283 = vmatprep.subr.mxu0 0.0
    %284 = vmatpush1.msra.mxu0 %v261
    %285 = vmatprep.subr.mxu0 0.0
    %286 = vmatpush1.msra.mxu0 0.0
    %287 = vmatprep.subr.mxu0 0.0
    %288 = vmatpush1.msra.mxu0 0.0
    %289 = vmatprep.subr.mxu0 0.0
    %290 = vmatpush1.msra.mxu0 0.0
    %291 = vmatprep.subr.mxu0 0.0
    %292 = vmatpush1.msra.mxu0 0.0
    %293 = vmatprep.subr.mxu0 0.0
    %294 = vmatpush1.msra.mxu0 0.0
    %295 = vmatprep.subr.mxu0 0.0
    %296 = vmatpush1.msra.mxu0 0.0
    %297 = vmatprep.subr.mxu0 0.0
    %298 = vmatpush1.msra.mxu0 0.0
    %299 = vmatprep.subr.mxu0 0.0
    %300 = vmatpush1.msra.mxu0 0.0
    %301 = vmatprep.subr.mxu0 0.0
    %302 = vmatpush1.msra.mxu0 0.0
    %303 = vmatprep.subr.mxu0 0.0
    %304 = vmatpush1.msra.mxu0 0.0
    %305 = vmatprep.subr.mxu0 0.0
    %306 = vmatpush1.msra.mxu0 0.0
    %307 = vmatprep.subr.mxu0 0.0
    %308 = vmatpush1.msra.mxu0 0.0
    %309 = vmatprep.subr.mxu0 0.0
    %310 = vmatpush1.msra.mxu0 0.0
    %311 = vmatprep.subr.mxu0 0.0
    %312 = vmatpush1.msra.mxu0 0.0
    %313 = vmatprep.subr.mxu0 0.0
    %314 = vmatpush1.msra.mxu0 0.0
    %315 = vmatprep.subr.mxu0 0.0
    %316 = vmatpush1.msra.mxu0 0.0
    %317 = vmatprep.subr.mxu0 0.0
    %318 = vmatpush1.msra.mxu0 0.0
    %319 = vmatprep.subr.mxu0 0.0
    %320 = vmatpush1.msra.mxu0 0.0
    %321 = vmatprep.subr.mxu0 0.0
    %322 = vmatpush1.msra.mxu0 0.0
    %323 = vmatprep.subr.mxu0 0.0
    %324 = vmatpush1.msra.mxu0 0.0
    %325 = vmatprep.subr.mxu0 0.0
    %326 = vmatpush1.msra.mxu0 0.0
    %327 = vmatprep.subr.mxu0 0.0
    %328 = vmatpush1.msra.mxu0 0.0
    %329 = vmatprep.subr.mxu0 0.0
    %330 = vmatpush1.msra.mxu0 0.0
    %331 = vmatprep.subr.mxu0 0.0
    %332 = vmatpush1.msra.mxu0 0.0
    %333 = vmatprep.subr.mxu0 0.0
    %334 = vmatpush1.msra.mxu0 0.0
    %335 = vmatprep.subr.mxu0 0.0
    %336 = vmatpush1.msra.mxu0 0.0
    %337 = vmatprep.subr.mxu0 0.0
    %338 = vmatpush1.msra.mxu0 0.0
    %339 = vmatprep.subr.mxu0 0.0
    %340 = vmatpush1.msra.mxu0 0.0
    %341 = vmatprep.mubr.f32.mxu0 0.0
    %342 = vmatmul.mubr.f32.gmra.mrb[0].mxu0 %v275
    %v343 = vpop.f32.mrb[0].mxu0
    %v344 = vadd.f32 %v272, %v343
    %v345 = vpop.f32.mrb[0].mxu0
    %346 = vdwg.mxu0
    %347 = vst [vmem:[#allocation3] sm:$0x1] %v344
    // Predicated region
    $region30: #{tpu_custom_call.1} parent=1 // pred_check
      _
    $region31: #{tpu_custom_call.1} parent=1 // pred_check_branch
      %349 = sbr.rel (0) target = $region33
    $region32: #{tpu_custom_call.1} parent=1 // pred_region
      %s351 = ssub.s32 16, 16
      %352 = vsyncadd [#allocation4], %s351
      %s354 = sshll.u32 [#allocation3], 4
      %s355 = int_to_ptr.vmem [resolvable:$true] %s354
      %357 = dma.vmem_to_hbm [thread:$0]  %s355, 16, %s7, [#allocation4]
    $region33: #{tpu_custom_call.1} parent=1 // pred_fallthru
      _
    // Predicated region
    $region34: #{tpu_custom_call.1} parent=1 // pred_check
      _
    $region35: #{tpu_custom_call.1} parent=1 // pred_check_branch
      %359 = sbr.rel (0) target = $region37
    $region36: #{tpu_custom_call.1} parent=1 // pred_region
      %360 = dma.done [#allocation4], 16
    $region37: #{tpu_custom_call.1} parent=1 // pred_fallthru
      _
    %361 = vsyncpa [#allocation4], 1

</llo_original>
